<compile_context>
chip_gen: v6e
topology: v6e:2x2x1
jax: 0.10.0
libtpu: 0.0.40
codegen_flags: <defaults>
</compile_context>

<pallas_src>
import math

import jax
import jax.numpy as jnp
from jax.experimental import pallas as pl
from jax.experimental.pallas import tpu as pltpu

EPS = 1e-5


def _round_up(x, m):
    return (x + m - 1) // m * m


# ---------------------------------------------------------------------------
# Kernel
# ---------------------------------------------------------------------------
def _prenorm_linear_kernel(x_ref, w_ref, b_ref, o_ref, xn_ref):
    """One (tm, tn) output tile.

    x_ref : (tm, D)  input rows (only consumed at j == 0)
    w_ref : (D, tn)  gamma-folded W^T, already in the compute dtype
    b_ref : (1, tn)  beta-folded bias, f32
    o_ref : (tm, tn) output tile
    xn_ref: (tm, D)  VMEM scratch with the normalized rows (compute dtype),
                     written once per row tile (j == 0), reused for all j.
    """
    @pl.when(pl.program_id(1) == 0)
    def _():
        x = x_ref[...].astype(jnp.float32)
        inv_d = 1.0 / x.shape[-1]
        # Single-pass moments (biased variance, matching nn.LayerNorm).
        mean = jnp.sum(x, axis=-1, keepdims=True) * inv_d
        ex2 = jnp.sum(x * x, axis=-1, keepdims=True) * inv_d
        var = jnp.maximum(ex2 - mean * mean, 0.0)   # guard cancellation
        xn = (x - mean) * jax.lax.rsqrt(var + EPS)
        xn_ref[...] = xn.astype(xn_ref.dtype)

    y = jnp.dot(xn_ref[...], w_ref[...], preferred_element_type=jnp.float32)
    o_ref[...] = (y + b_ref[...]).astype(o_ref.dtype)


# ---------------------------------------------------------------------------
# One-time parameter fusion (call once per model, cache the result)
# ---------------------------------------------------------------------------
def make_prenorm_linear_params(gamma, beta, w_t, bias, compute_dtype=None):
    """Fold LayerNorm affine params into the Linear weight/bias.

    w_t is W.T with shape (in_dim, out_dim).  This also performs the single
    cast of the weight to compute_dtype (pass jnp.bfloat16 for f32 models to
    double the MXU rate and halve the weight footprint).
    """
    if compute_dtype is None:
        compute_dtype = w_t.dtype
    w32 = w_t.astype(jnp.float32)
    w_fused = (gamma.astype(jnp.float32)[:, None] * w32).astype(compute_dtype)
    b_fused = (beta.astype(jnp.float32) @ w32
               + bias.astype(jnp.float32)).reshape(1, -1)
    return w_fused, b_fused


# ---------------------------------------------------------------------------
# Capability / hardware probes (cached, module-level)
# ---------------------------------------------------------------------------
_BUFFERED1_SUPPORTED = None


def _buffered1_supported():
    """One-time probe: does this JAX build accept pipeline_mode=pl.Buffered(1)?"""
    global _BUFFERED1_SUPPORTED
    if _BUFFERED1_SUPPORTED is None:
        def _probe(x_ref, o_ref):
            o_ref[...] = x_ref[...]
        try:
            with jax.ensure_compile_time_eval():
                out = pl.pallas_call(
                    _probe,
                    out_shape=jax.ShapeDtypeStruct((8, 128), jnp.float32),
                    grid=(1,),
                    in_specs=[pl.BlockSpec((8, 128), lambda i: (0, 0),
                                           pipeline_mode=pl.Buffered(1))],
                    out_specs=pl.BlockSpec((8, 128), lambda i: (0, 0)),
                )(jnp.zeros((8, 128), jnp.float32))
                jax.block_until_ready(out)
            _BUFFERED1_SUPPORTED = True
        except Exception:
            _BUFFERED1_SUPPORTED = False
    return _BUFFERED1_SUPPORTED


def _default_vmem_limit_bytes():
    """Budget below physical VMEM, leaving headroom for compiler scratch."""
    cap = 128 << 20
    try:
        info = pltpu.get_tpu_info()
        cap = int(getattr(info, "vmem_capacity_bytes", cap))
    except Exception:
        pass
    # v7x (64 MiB) -> ~48 MiB; v5e/v6e (128 MiB) -> 100 MiB.
    return int(max(32 << 20, min(cap - (16 << 20), 100 << 20)))


# ---------------------------------------------------------------------------
# Wrapper
# ---------------------------------------------------------------------------
def prenorm_linear(x, w_fused, b_fused, *, tm=256, tn=None, out_dtype=None,
                   vmem_limit_bytes=None):
    """Fused PreNorm(LayerNorm(D)) + Linear(D, D).

    x: (..., D).  w_fused: (D, D) gamma-folded W^T in the compute dtype.
    b_fused: (1, D) f32 beta-folded bias (from make_prenorm_linear_params).
    tm: row tile (MXU M).  tn: output-column tile (None = auto; must be D or a
    multiple of 128 dividing D).  out_dtype: output dtype (default x.dtype;
    pass bf16 when the consumer accepts it to halve write bandwidth).
    jit-compatible (no host sync); the Buffered(1) probe is a one-time
    module-level check — warm it outside jit if you plan to jit this.
    """
    *lead, D = x.shape
    M = int(math.prod(lead)) if lead else 1
    assert w_fused.shape == (D, D)
    compute_dtype = w_fused.dtype
    if out_dtype is None:
        out_dtype = x.dtype
    if vmem_limit_bytes is None:
        vmem_limit_bytes = _default_vmem_limit_bytes()

    # Row tile aligned to sublane packing of the input dtype, clamped to M.
    row_align = max(8, 32 // jnp.dtype(x.dtype).itemsize)
    tm = _round_up(min(tm, _round_up(M, row_align)), row_align)

    itemsize = jnp.dtype(compute_dtype).itemsize
    if tn is None:
        if D * D * itemsize <= vmem_limit_bytes // 3:
            tn = D                       # weight resident: one HBM fetch total
        else:
            # Column-tile the weight (mandatory on v7x for large D): largest
            # pow2-multiple-of-128 divisor whose double-buffered tile fits in
            # ~1/4 of the VMEM budget.
            budget = vmem_limit_bytes // 4
            tn, c = 128, 128
            while c <= D // 2:
                if D % c == 0 and D * c * itemsize * 2 <= budget:
                    tn = c
                c *= 2
    assert tn == D or (D % tn == 0 and tn % 128 == 0), (
        "tn must equal D or be a multiple of 128 dividing D")

    x2 = x.reshape(M, D)
    grid = (pl.cdiv(M, tm), D // tn)     # rows parallel, cols innermost/serial

    # Single-buffer grid-invariant operands only when the weight is resident
    # and large enough for the VMEM saving to matter.
    w_resident = (tn == D)
    use_single_buf = (w_resident and D * D * itemsize >= (1 << 20)
                      and _buffered1_supported())

    def inv_spec(shape, index_map):
        if use_single_buf:
            return pl.BlockSpec(shape, index_map, pipeline_mode=pl.Buffered(1))
        return pl.BlockSpec(shape, index_map)

    in_specs = [
        pl.BlockSpec((tm, D), lambda i, j: (i, 0)),   # x rows: fetched once per i
        inv_spec((D, tn), lambda i, j: (0, j)),       # fused W^T
        inv_spec((1, tn), lambda i, j: (0, j)),       # fused bias
    ]
    out_spec = pl.BlockSpec((tm, tn), lambda i, j: (i, j))

    out = pl.pallas_call(
        _prenorm_linear_kernel,
        out_shape=jax.ShapeDtypeStruct((M, D), out_dtype),
        grid=grid,
        in_specs=in_specs,
        out_specs=out_spec,
        scratch_shapes=[pltpu.VMEM((tm, D), compute_dtype)],
        compiler_params=pltpu.CompilerParams(
            dimension_semantics=("parallel", "arbitrary"),
            vmem_limit_bytes=int(vmem_limit_bytes)),
    )(x2, w_fused, b_fused)

    return out.reshape(*lead, D)


# ---------------------------------------------------------------------------
# Demo / self-test
# ---------------------------------------------------------------------------
if __name__ == "__main__":
    B, N, D = 2, 8, 32
    key = jax.random.PRNGKey(0)
    kx, kw, kb, kg, kbt, kx2 = jax.random.split(key, 6)

    x = jax.random.normal(kx, (B, N, D), dtype=jnp.float32)
    gamma = 1.0 + 0.1 * jax.random.normal(kg, (D,), dtype=jnp.float32)
    beta = 0.1 * jax.random.normal(kbt, (D,), dtype=jnp.float32)
    w = jax.random.normal(kw, (D, D), dtype=jnp.float32) * (1.0 / jnp.sqrt(D))
    bias = 0.01 * jax.random.normal(kb, (D,), dtype=jnp.float32)
    w_t = w.T  # (in, out)

    def ref_fn(xx):
        mean = jnp.mean(xx, axis=-1, keepdims=True)
        var = jnp.mean((xx - mean) ** 2, axis=-1, keepdims=True)
        xn = (xx - mean) * jax.lax.rsqrt(var + EPS) * gamma + beta
        return jnp.einsum("bnd,od->bno", xn, w) + bias

    # f32 compute path: fold gamma/beta into W/bias ONCE, then call.
    w_f32, b_f32 = make_prenorm_linear_params(gamma, beta, w_t, bias,
                                              compute_dtype=jnp.float32)
    out = jax.block_until_ready(prenorm_linear(x, w_f32, b_f32))
    assert jnp.allclose(out, ref_fn(x), atol=1e-4, rtol=1e-4)

    # Row count not divisible by the sublane tile -> exercises the masked
    # (unpadded) tail-block path.
    x_odd = jax.random.normal(kx2, (3, 5, D), dtype=jnp.float32)
    out_odd = jax.block_until_ready(prenorm_linear(x_odd, w_f32, b_f32))
    assert jnp.allclose(out_odd, ref_fn(x_odd), atol=1e-4, rtol=1e-4)

    # bf16 MXU path (recommended for f32 production models): loose tolerance.
    w_bf16, b_bf16 = make_prenorm_linear_params(gamma, beta, w_t, bias,
                                                compute_dtype=jnp.bfloat16)
    out_bf16 = jax.block_until_ready(prenorm_linear(x, w_bf16, b_bf16))
    assert jnp.allclose(out_bf16, ref_fn(x), atol=5e-2, rtol=5e-2)

    print("KERNEL_OK")
</pallas_src>

<mosaic_0001>
module attributes {stable_mosaic.version = 11 : i64} {
  func.func @_prenorm_linear_kernel(%arg0: i32, %arg1: i32, %arg2: memref<16x32xf32, #tpu.memory_space<vmem>>, %arg3: memref<32x32xf32, #tpu.memory_space<vmem>>, %arg4: memref<1x32xf32, #tpu.memory_space<vmem>>, %arg5: memref<16x32xf32, #tpu.memory_space<vmem>>, %arg6: memref<16x32xf32, #tpu.memory_space<vmem>>) attributes {dimension_semantics = [#tpu.dimension_semantics<parallel>, #tpu.dimension_semantics<arbitrary>], iteration_bounds = array<i64: 1, 1>, scalar_prefetch = 0 : i64, scratch_operands = 1 : i64, tpu.core_type = #tpu.core_type<tc>, window_params = [{transform_indices = @transform_0, window_bounds = array<i64: 16, 32>}, {transform_indices = @transform_1, window_bounds = array<i64: 32, 32>}, {transform_indices = @transform_2, window_bounds = array<i64: 1, 32>}, {transform_indices = @transform_3, window_bounds = array<i64: 16, 32>}]} {
    %c0_i32 = arith.constant 0 : i32
    %0 = arith.cmpi eq, %arg1, %c0_i32 : i32
    %1 = arith.extui %0 : i1 to i32
    %c0_i32_0 = arith.constant 0 : i32
    %2 = arith.cmpi ne, %1, %c0_i32_0 : i32
    scf.if %2 {
      %c0_8 = arith.constant 0 : index
      %c0_9 = arith.constant 0 : index
      %10 = vector.load %arg2[%c0_8, %c0_9] : memref<16x32xf32, #tpu.memory_space<vmem>>, vector<16x32xf32>
      %cst_10 = arith.constant dense<0.000000e+00> : vector<16xf32>
      %11 = vector.multi_reduction <add>, %10, %cst_10 [1] : vector<16x32xf32> to vector<16xf32>
      %12 = vector.shape_cast %11 : vector<16xf32> to vector<16x1xf32>
      %cst_11 = arith.constant 3.125000e-02 : f32
      %13 = vector.broadcast %cst_11 : f32 to vector<16x1xf32>
      %14 = arith.mulf %12, %13 : vector<16x1xf32>
      %15 = arith.mulf %10, %10 : vector<16x32xf32>
      %cst_12 = arith.constant dense<0.000000e+00> : vector<16xf32>
      %16 = vector.multi_reduction <add>, %15, %cst_12 [1] : vector<16x32xf32> to vector<16xf32>
      %17 = vector.shape_cast %16 : vector<16xf32> to vector<16x1xf32>
      %cst_13 = arith.constant 3.125000e-02 : f32
      %18 = vector.broadcast %cst_13 : f32 to vector<16x1xf32>
      %19 = arith.mulf %17, %18 : vector<16x1xf32>
      %20 = arith.mulf %14, %14 : vector<16x1xf32>
      %21 = arith.subf %19, %20 : vector<16x1xf32>
      %cst_14 = arith.constant 0.000000e+00 : f32
      %22 = vector.broadcast %cst_14 : f32 to vector<16x1xf32>
      %23 = arith.maximumf %21, %22 : vector<16x1xf32>
      %24 = vector.broadcast %14 : vector<16x1xf32> to vector<16x32xf32>
      %25 = arith.subf %10, %24 : vector<16x32xf32>
      %cst_15 = arith.constant 9.99999974E-6 : f32
      %26 = vector.broadcast %cst_15 : f32 to vector<16x1xf32>
      %27 = arith.addf %23, %26 : vector<16x1xf32>
      %28 = math.rsqrt %27 : vector<16x1xf32>
      %29 = vector.broadcast %28 : vector<16x1xf32> to vector<16x32xf32>
      %30 = arith.mulf %25, %29 : vector<16x32xf32>
      %c0_16 = arith.constant 0 : index
      %c0_17 = arith.constant 0 : index
      %31 = vector.load %arg6[%c0_16, %c0_17] : memref<16x32xf32, #tpu.memory_space<vmem>>, vector<16x32xf32>
      tpu.vector_store %arg6[%c0_16, %c0_17], %30 {strides = array<i32>} : memref<16x32xf32, #tpu.memory_space<vmem>>, vector<16x32xf32>,
    } else {
    }
    %c0 = arith.constant 0 : index
    %c0_1 = arith.constant 0 : index
    %3 = vector.load %arg6[%c0, %c0_1] : memref<16x32xf32, #tpu.memory_space<vmem>>, vector<16x32xf32>
    %c0_2 = arith.constant 0 : index
    %c0_3 = arith.constant 0 : index
    %4 = vector.load %arg3[%c0_2, %c0_3] : memref<32x32xf32, #tpu.memory_space<vmem>>, vector<32x32xf32>
    %cst = arith.constant dense<0.000000e+00> : vector<16x32xf32>
    %5 = tpu.matmul %3, %4, %cst {dimension_numbers = #tpu.dot_dimension_numbers<[1], [0], [0], [1], [0, 0, 1, 1], [], []>} : vector<16x32xf32>, vector<32x32xf32>, vector<16x32xf32> -> vector<16x32xf32>
    %c0_4 = arith.constant 0 : index
    %c0_5 = arith.constant 0 : index
    %6 = vector.load %arg4[%c0_4, %c0_5] : memref<1x32xf32, #tpu.memory_space<vmem>>, vector<1x32xf32>
    %7 = vector.broadcast %6 : vector<1x32xf32> to vector<16x32xf32>
    %8 = arith.addf %5, %7 : vector<16x32xf32>
    %c0_6 = arith.constant 0 : index
    %c0_7 = arith.constant 0 : index
    %9 = vector.load %arg5[%c0_6, %c0_7] : memref<16x32xf32, #tpu.memory_space<vmem>>, vector<16x32xf32>
    tpu.vector_store %arg5[%c0_6, %c0_7], %8 {strides = array<i32>} : memref<16x32xf32, #tpu.memory_space<vmem>>, vector<16x32xf32>,
    return
  }
  func.func @transform_0(%arg0: i32, %arg1: i32) -> (i32, i32) {
    %c0_i32 = arith.constant 0 : i32
    %c0_i32_0 = arith.constant 0 : i32
    return %arg0, %c0_i32 : i32, i32
  }
  func.func @transform_1(%arg0: i32, %arg1: i32) -> (i32, i32) {
    %c0_i32 = arith.constant 0 : i32
    %c0_i32_0 = arith.constant 0 : i32
    return %c0_i32, %arg1 : i32, i32
  }
  func.func @transform_2(%arg0: i32, %arg1: i32) -> (i32, i32) {
    %c0_i32 = arith.constant 0 : i32
    %c0_i32_0 = arith.constant 0 : i32
    return %c0_i32, %arg1 : i32, i32
  }
  func.func @transform_3(%arg0: i32, %arg1: i32) -> (i32, i32) {
    %c0_i32 = arith.constant 0 : i32
    return %arg0, %arg1 : i32, i32
  }
}

</mosaic_0001>

<llo_original>
// kernel: tpu_custom_call.1
$region0: #{tpu_custom_call.1}
  #allocation0 [shape = 'u32[]', space=smem, size = 0x4, offset = 0x4, fixed_abs, tag = 'smem constant byte address 0x4 - core index']
  #allocation1 [shape = 'u32[144,128]{1,0:T(1,128)}', space=vmem, size = 0x12000, scoped, tag = 'internal scratch']
  #allocation2 [shape = 'f32[16,32]{1,0:T(8,128)}', space=vmem, size = 0x2000, scoped, tag = 'scratch operand']
  %s0 = inlined_call_operand.hbm [shape: f32[16,32], index: 0, kind: input, shape index: {}]
  %s1 = inlined_call_operand.hbm [shape: f32[32,32], index: 1, kind: input, shape index: {}]
  %s2 = inlined_call_operand.vmem [shape: f32[1,32], index: 2, kind: input, shape index: {}]
  %s3 = inlined_call_operand.hbm [shape: f32[16,32], index: 3, kind: output, shape index: {}]
  %s4 = sld [smem:[#allocation0]]
  $region34: #{tpu_custom_call.1} parent=0
    _
  %s6 = ssub.s32 1, %s4
  %s7 = scalar_select 0, %s6, %s4
  $region1: #{tpu_custom_call.1} parent=0
    #allocation3 [shape = 'u8[8192]{0}', space=vmem, size = 0x2000, scoped, tag = 'input window, operand 0, single buffered']
    #allocation4 [shape = 's32[1]{0}', space=sflag, size = 0x4, scoped, tag = 'scoped memory for tpu_custom_call.1']
    #allocation5 [shape = 's32[1]{0}', space=sflag, size = 0x4, scoped, tag = 'scoped memory for tpu_custom_call.1']
    #allocation6 [shape = 'u8[16384]{0}', space=vmem, size = 0x4000, scoped, tag = 'input window, operand 1, single buffered']
    #allocation7 [shape = 's32[1]{0}', space=sflag, size = 0x4, scoped, tag = 'scoped memory for tpu_custom_call.1']
    #allocation8 [shape = 'u8[8192]{0}', space=vmem, size = 0x2000, scoped, tag = 'output window, operand 0, single buffered']
    %8 = vsyncpa [#allocation4], 0
    %9 = vsyncpa [#allocation7], 0
    %10 = vsyncpa [#allocation5], 0
    // Predicated region
    $region2: #{tpu_custom_call.1} parent=1 // pred_check
      _
    $region3: #{tpu_custom_call.1} parent=1 // pred_check_branch
      %12 = sbr.rel (0) target = $region5
    $region4: #{tpu_custom_call.1} parent=1 // pred_region
      %s14 = ssub.s32 256, 256
      %15 = vsyncadd [#allocation4], %s14
      %s16 = sshll.u32 [#allocation3], 4
      %s17 = int_to_ptr.vmem [resolvable:$true] %s16
      %22 = dma.hbm_to_vmem [thread:$0]  %s0, 256, %s17, [#allocation4], 128, 128, 8
    $region5: #{tpu_custom_call.1} parent=1 // pred_fallthru
      _
    // Predicated region
    $region6: #{tpu_custom_call.1} parent=1 // pred_check
      _
    $region7: #{tpu_custom_call.1} parent=1 // pred_check_branch
      %24 = sbr.rel (0) target = $region9
    $region8: #{tpu_custom_call.1} parent=1 // pred_region
      %s26 = ssub.s32 512, 512
      %27 = vsyncadd [#allocation7], %s26
      %s28 = sshll.u32 [#allocation6], 4
      %s29 = int_to_ptr.vmem [resolvable:$true] %s28
      %34 = dma.hbm_to_vmem [thread:$0]  %s1, 512, %s29, [#allocation7], 128, 128, 8
    $region9: #{tpu_custom_call.1} parent=1 // pred_fallthru
      _
    // Predicated region
    $region10: #{tpu_custom_call.1} parent=1 // pred_check
      _
    $region11: #{tpu_custom_call.1} parent=1 // pred_check_branch
      %36 = sbr.rel (0) target = $region13
    $region12: #{tpu_custom_call.1} parent=1 // pred_region
      _
    $region13: #{tpu_custom_call.1} parent=1 // pred_fallthru
      _
    // Predicated region
    $region14: #{tpu_custom_call.1} parent=1 // pred_check
      _
    $region15: #{tpu_custom_call.1} parent=1 // pred_check_branch
      %38 = sbr.rel (0) target = $region17
    $region16: #{tpu_custom_call.1} parent=1 // pred_region
      %39 = dma.done [#allocation4], 256
    $region17: #{tpu_custom_call.1} parent=1 // pred_fallthru
      _
    // Predicated region
    $region18: #{tpu_custom_call.1} parent=1 // pred_check
      _
    $region19: #{tpu_custom_call.1} parent=1 // pred_check_branch
      %41 = sbr.rel (0) target = $region21
    $region20: #{tpu_custom_call.1} parent=1 // pred_region
      %42 = dma.done [#allocation7], 512
    $region21: #{tpu_custom_call.1} parent=1 // pred_fallthru
      _
    %p43 = scmp.eq.s32.totalorder 0, 0
    // Predicated region
    $region22: #{tpu_custom_call.1} parent=1 // pred_check
      %p44 = pneg %p43
    $region23: #{tpu_custom_call.1} parent=1 // pred_check_branch
      %46 = sbr.rel (%p44) target = $region25
    $region24: #{tpu_custom_call.1} parent=1 // pred_region
      %v47 = vld [vmem:[#allocation3] sm:$0xff]
      %v48 = vld [vmem:[#allocation3 + $0x8] sm:$0xff]
      %vm49 = vcmask 261120
      %v50 = vsel %vm49, %v47, 0.0
      %51 = vadd.xlane.f32.xlu0 %v50
      %v52 = vpop.xlane.xlu0 %51
      %v53 = vsel %vm49, %v48, 0.0
      %54 = vadd.xlane.f32.xlu0 %v53
      %v55 = vpop.xlane.xlu0 %54
      %v56 = vmul.f32 %v52, 0.03125
      %v57 = vmul.f32 %v55, 0.03125
      %v58 = vmul.f32 %v47, %v47
      %v59 = vmul.f32 %v48, %v48
      %v60 = vsel %vm49, %v58, 0.0
      %61 = vadd.xlane.f32.xlu0 %v60
      %v62 = vpop.xlane.xlu0 %61
      %v63 = vsel %vm49, %v59, 0.0
      %64 = vadd.xlane.f32.xlu0 %v63
      %v65 = vpop.xlane.xlu0 %64
      %v66 = vmul.f32 %v62, 0.03125
      %v67 = vmul.f32 %v65, 0.03125
      %v68 = vmul.f32 %v56, %v56
      %v69 = vmul.f32 %v57, %v57
      %v70 = vsub.f32 %v66, %v68
      %v71 = vsub.f32 %v67, %v69
      %v72 = vmax.f32 %v70, 0.0
      %v73 = vmax.f32 %v71, 0.0
      %v74 = vsub.f32 %v47, %v56
      %v75 = vsub.f32 %v48, %v57
      %v76 = vadd.f32 %v72, 1e-05
      %v77 = vadd.f32 %v73, 1e-05
      %v78 = vrsqrt.pop %v76
      %v79 = vrsqrt.pop %v77
      %v80 = vmul.f32 %v74, %v78
      %v81 = vmul.f32 %v75, %v79
      %82 = vst.msk [vmem:[#allocation2] sm:$0xff] %vm49, %v80
      %83 = vst.msk [vmem:[#allocation2 + $0x8] sm:$0xff] %vm49, %v81
    $region25: #{tpu_custom_call.1} parent=1 // pred_fallthru
      _
    %v84 = vld [vmem:[#allocation2] sm:$0xff]
    %v85 = vld [vmem:[#allocation2 + $0x8] sm:$0xff]
    %v86 = vld [vmem:[#allocation6] sm:$0xff]
    %v87 = vld [vmem:[#allocation6 + $0x8] sm:$0xff]
    %v88 = vld [vmem:[#allocation6 + $0x10] sm:$0xff]
    %v89 = vld [vmem:[#allocation6 + $0x18] sm:$0xff]
    %v90 = vld [vmem:[%s2] sm:$0x1]
    %v92 = vlaneseq
    %v93 = vshrl.u32 %v92, 7
    %v94 = vsub.s32 0, %v93
    %v95 = vrot.slane %v90, %v94
    %vm97 = vcmask 261120
    %v99 = vsel %vm97, %v84, 0
    %v102 = vsel %vm97, %v85, 0
    %104 = vmatprep.subr.mxu0 0.0
    %105 = vmatpush1.msra.mxu0 0.0
    %106 = vmatprep.subr.mxu0 0.0
    %107 = vmatpush1.msra.mxu0 0.0
    %108 = vmatprep.subr.mxu0 0.0
    %109 = vmatpush1.msra.mxu0 0.0
    %110 = vmatprep.subr.mxu0 0.0
    %111 = vmatpush1.msra.mxu0 0.0
    %112 = vmatprep.subr.mxu0 0.0
    %113 = vmatpush1.msra.mxu0 0.0
    %114 = vmatprep.subr.mxu0 0.0
    %115 = vmatpush1.msra.mxu0 0.0
    %116 = vmatprep.subr.mxu0 0.0
    %117 = vmatpush1.msra.mxu0 0.0
    %118 = vmatprep.subr.mxu0 0.0
    %119 = vmatpush1.msra.mxu0 0.0
    %120 = vmatprep.subr.mxu0 0.0
    %121 = vmatpush1.msra.mxu0 0.0
    %122 = vmatprep.subr.mxu0 0.0
    %123 = vmatpush1.msra.mxu0 0.0
    %124 = vmatprep.subr.mxu0 0.0
    %125 = vmatpush1.msra.mxu0 0.0
    %126 = vmatprep.subr.mxu0 0.0
    %127 = vmatpush1.msra.mxu0 0.0
    %128 = vmatprep.subr.mxu0 0.0
    %129 = vmatpush1.msra.mxu0 %v89
    %130 = vmatprep.subr.mxu0 0.0
    %131 = vmatpush1.msra.mxu0 %v88
    %132 = vmatprep.subr.mxu0 0.0
    %133 = vmatpush1.msra.mxu0 %v87
    %134 = vmatprep.subr.mxu0 0.0
    %135 = vmatpush1.msra.mxu0 %v86
    %136 = vmatprep.subr.mxu0 0.0
    %137 = vmatpush2.msra.mxu0 0.0
    %138 = vmatprep.subr.mxu0 0.0
    %139 = vmatpush2.msra.mxu0 0.0
    %140 = vmatprep.subr.mxu0 0.0
    %141 = vmatpush2.msra.mxu0 0.0
    %142 = vmatprep.subr.mxu0 0.0
    %143 = vmatpush2.msra.mxu0 0.0
    %144 = vmatprep.subr.mxu0 0.0
    %145 = vmatpush2.msra.mxu0 0.0
    %146 = vmatprep.subr.mxu0 0.0
    %147 = vmatpush2.msra.mxu0 0.0
    %148 = vmatprep.subr.mxu0 0.0
    %149 = vmatpush2.msra.mxu0 0.0
    %150 = vmatprep.subr.mxu0 0.0
    %151 = vmatpush2.msra.mxu0 0.0
    %152 = vmatprep.subr.mxu0 0.0
    %153 = vmatpush2.msra.mxu0 0.0
    %154 = vmatprep.subr.mxu0 0.0
    %155 = vmatpush2.msra.mxu0 0.0
    %156 = vmatprep.subr.mxu0 0.0
    %157 = vmatpush2.msra.mxu0 0.0
    %158 = vmatprep.subr.mxu0 0.0
    %159 = vmatpush2.msra.mxu0 0.0
    %160 = vmatprep.subr.mxu0 0.0
    %161 = vmatpush2.msra.mxu0 0.0
    %162 = vmatprep.subr.mxu0 0.0
    %163 = vmatpush2.msra.mxu0 0.0
    %164 = vmatprep.subr.mxu0 0.0
    %165 = vmatpush2.msra.mxu0 0.0
    %166 = vmatprep.subr.mxu0 0.0
    %167 = vmatpush2.msra.mxu0 0.0
    %168 = vmatprep.mubr.f32.mxu0 0.0
    %169 = vmatmul.mubr.f32.gmra.mxu0 %v99
    %v170 = vpop.f32.mrf.mxu0
    %v171 = vadd.f32 %v95, %v170
    %v172 = vpop.f32.mrf.mxu0
    %173 = vmatprep.mubr.f32.mxu0 0.0
    %174 = vmatmul.mubr.f32.gmra.mxu0 %v102
    %v175 = vpop.f32.mrf.mxu0
    %v176 = vadd.f32 %v95, %v175
    %v177 = vpop.f32.mrf.mxu0
    %178 = vdwg.mxu0
    %179 = vst.msk [vmem:[#allocation8] sm:$0xff] %vm97, %v171
    %180 = vst.msk [vmem:[#allocation8 + $0x8] sm:$0xff] %vm97, %v176
    // Predicated region
    $region26: #{tpu_custom_call.1} parent=1 // pred_check
      _
    $region27: #{tpu_custom_call.1} parent=1 // pred_check_branch
      %182 = sbr.rel (0) target = $region29
    $region28: #{tpu_custom_call.1} parent=1 // pred_region
      %s184 = ssub.s32 256, 256
      %185 = vsyncadd [#allocation5], %s184
      %s186 = sshll.u32 [#allocation8], 4
      %s187 = int_to_ptr.vmem [resolvable:$true] %s186
      %192 = dma.vmem_to_hbm [thread:$0]  %s187, 256, %s3, [#allocation5], 128, 128, 8
    $region29: #{tpu_custom_call.1} parent=1 // pred_fallthru
      _
    // Predicated region
    $region30: #{tpu_custom_call.1} parent=1 // pred_check
      _
    $region31: #{tpu_custom_call.1} parent=1 // pred_check_branch
      %194 = sbr.rel (0) target = $region33
    $region32: #{tpu_custom_call.1} parent=1 // pred_region
      %195 = dma.done [#allocation5], 256
    $region33: #{tpu_custom_call.1} parent=1 // pred_fallthru
      _
    %196 = vsyncpa [#allocation4], 1
    %197 = vsyncpa [#allocation7], 1
    %198 = vsyncpa [#allocation5], 1

</llo_original>
